<compile_context>
chip_gen: v7x
topology: tpu7x:2x2x1
jax: 0.10.0
libtpu: 0.0.40
codegen_flags: <defaults>
</compile_context>

<pallas_src>
import functools

import jax
import jax.numpy as jnp
from jax import lax
from jax.experimental import pallas as pl
from jax.experimental.pallas import tpu as pltpu


def _input_embedding_kernel(ids_ref, seed_ref, tbl_ref, pos_ref, out_ref,
                            gath_ref, *, seq_len, s_tile, embed_len,
                            dropout_p, training):
    b = pl.program_id(0)
    st = pl.program_id(1)
    base = b * seq_len + st * s_tile

    # In-register row gather from the VMEM-resident token table.
    def gather_row(s, carry):
        tok = ids_ref[base + s]
        gath_ref[pl.ds(s, 1), :] = tbl_ref[pl.ds(tok, 1), :]
        return carry

    lax.fori_loop(0, s_tile, gather_row, 0, unroll=min(s_tile, 8))

    # Token embedding + positional encoding (pos slab already f32).
    y = gath_ref[...].astype(jnp.float32) + pos_ref[...]

    if training and dropout_p >= 1.0:
        y = jnp.zeros_like(y)                  # nn.Dropout(1.0) -> all zeros
    elif training and dropout_p > 0.0:
        # Inverted dropout (matches nn.Dropout in distribution, not bit-exact
        # with torch's RNG).
        pltpu.prng_seed(seed_ref[0], b, st)    # decorrelate per (seed, b, st)
        bits = pltpu.bitcast(
            pltpu.prng_random_bits((s_tile, embed_len)), jnp.uint32)
        thresh = jnp.uint32(min(int(round(dropout_p * 4294967296.0)),
                                4294967295))
        keep = bits >= thresh
        y = jnp.where(keep, y * (1.0 / (1.0 - dropout_p)), 0.0)

    out_ref[...] = y.astype(out_ref.dtype)


def _choose_s_tile(seq_len, embed_len, itemsize, budget_bytes=2 << 20):
    """Full seq if small, else largest multiple-of-8 divisor under budget."""
    if seq_len * embed_len * itemsize <= budget_bytes:
        return seq_len
    for t in range(seq_len - 1, 0, -1):
        if (seq_len % t == 0 and t % 8 == 0
                and t * embed_len * itemsize <= budget_bytes):
            return t
    return seq_len


def input_embedding(ids, table1, table2, *, dropout_p=0.1, training=False,
                    seed=0):
    """Pallas equivalent of InputEmbedding.forward(ids)."""
    B, S = ids.shape
    V, E = table1.shape
    assert table2.shape == (V, E)
    assert S <= V, "positions arange(S) must index into the (V, E) pos table"

    itemsize = table1.dtype.itemsize
    table_bytes = V * E * itemsize
    if table_bytes > (16 << 20):
        # TODO(synk): large-vocab path (chunked, double-buffered HBM row
        # gather via pltpu.make_async_copy ring) -- not needed at demo sizes.
        raise NotImplementedError("token table too large for VMEM residency")

    s_tile = _choose_s_tile(S, E, itemsize)
    n_s_tiles = S // s_tile

    # Only the first S positional rows are ever read; pre-cast once to f32 so
    # the kernel never re-casts an invariant operand per grid step.
    pos_table = table2[:S].astype(jnp.float32)

    out_dtype = table1.dtype                       # bf16 tables -> bf16 store
    ids_flat = ids.reshape(-1).astype(jnp.int32)   # 1-D SMEM, no 2-D padding
    seed_arr = jnp.array([seed], dtype=jnp.int32)

    kernel = functools.partial(
        _input_embedding_kernel,
        seq_len=S, s_tile=s_tile, embed_len=E,
        dropout_p=float(dropout_p), training=bool(training))

    grid_spec = pltpu.PrefetchScalarGridSpec(
        num_scalar_prefetch=2,                     # ids_flat, seed -> SMEM
        grid=(B, n_s_tiles),
        in_specs=[
            # Whole token table, VMEM-resident (block-invariant index_map ->
            # copied in once and reused for every grid step).
            pl.BlockSpec((V, E), lambda b, st, ids, seed: (0, 0)),
            # Positional rows for this sequence tile.
            pl.BlockSpec((s_tile, E), lambda b, st, ids, seed: (st, 0)),
        ],
        out_specs=pl.BlockSpec((None, s_tile, E),
                               lambda b, st, ids, seed: (b, st, 0)),
        scratch_shapes=[
            pltpu.VMEM((s_tile, E), table1.dtype),  # gathered token rows
        ],
    )

    # Explicit VMEM budget: table (x2 buffers) + pos (x2) + out (x2) + scratch.
    resident = (2 * table_bytes
                + 2 * s_tile * E * 4
                + 2 * s_tile * E * jnp.dtype(out_dtype).itemsize
                + s_tile * E * itemsize)
    vmem_limit = int(min(64 << 20, max(32 << 20, resident + (4 << 20))))

    return pl.pallas_call(
        kernel,
        out_shape=jax.ShapeDtypeStruct((B, S, E), out_dtype),
        grid_spec=grid_spec,
        compiler_params=pltpu.CompilerParams(
            dimension_semantics=("parallel", "parallel"),
            vmem_limit_bytes=vmem_limit),
    )(ids_flat, seed_arr, table1, pos_table)


if __name__ == "__main__":
    # batch=2, seq_len=8, input_vocab_size=64, embed_len=128 (lane-dense).
    B, S, V, E = 2, 8, 64, 128

    key = jax.random.PRNGKey(0)
    k1, k2, k3 = jax.random.split(key, 3)

    # Deterministic synthetic parameters (two (V, E) embedding tables).
    table1 = jax.random.normal(k1, (V, E), dtype=jnp.float32)  # firstEmbedding
    table2 = jax.random.normal(k2, (V, E), dtype=jnp.float32)  # secondEmbedding
    ids = jax.random.randint(k3, (B, S), 0, V, dtype=jnp.int32)

    # Eval-mode forward (dropout = identity), matching module.eval().
    out = input_embedding(ids, table1, table2, dropout_p=0.1, training=False)
    out = jax.block_until_ready(out)

    # Pure-JAX reference of the forward pass.
    ref = table1[ids] + table2[jnp.arange(S)][None, :, :]
    assert out.shape == (B, S, E)
    assert out.dtype == table1.dtype
    assert jnp.allclose(out.astype(jnp.float32), ref, atol=1e-5, rtol=1e-5), \
        "mismatch vs reference"

    print("KERNEL_OK")
</pallas_src>

<mosaic_0001>
module attributes {stable_mosaic.version = 11 : i64} {
  func.func @_input_embedding_kernel(%arg0: i32, %arg1: i32, %arg2: memref<16xi32, #tpu.memory_space<smem>>, %arg3: memref<1xi32, #tpu.memory_space<smem>>, %arg4: memref<64x128xf32, #tpu.memory_space<vmem>>, %arg5: memref<8x128xf32, #tpu.memory_space<vmem>>, %arg6: memref<1x8x128xf32, #tpu.memory_space<vmem>>, %arg7: memref<8x128xf32, #tpu.memory_space<vmem>>) attributes {dimension_semantics = [#tpu.dimension_semantics<parallel>, #tpu.dimension_semantics<parallel>], iteration_bounds = array<i64: 2, 1>, scalar_prefetch = 2 : i64, scratch_operands = 1 : i64, tpu.core_type = #tpu.core_type<tc>, window_params = [{pipeline_mode = #tpu.pipeline_mode<synchronous>, transform_indices = @transform_0, window_bounds = array<i64: 64, 128>}, {transform_indices = @transform_1, window_bounds = array<i64: 8, 128>}, {transform_indices = @transform_2, window_bounds = array<i64: 1, 8, 128>}]} {
    %c8_i32 = arith.constant 8 : i32
    %0 = arith.muli %arg0, %c8_i32 : i32
    %c8_i32_0 = arith.constant 8 : i32
    %1 = arith.muli %arg1, %c8_i32_0 : i32
    %2 = arith.addi %0, %1 : i32
    %c0_i32 = arith.constant 0 : i32
    %3 = arith.addi %2, %c0_i32 : i32
    %4 = arith.index_cast %3 : i32 to index
    %5 = memref.load %arg2[%4] : memref<16xi32, #tpu.memory_space<smem>>
    %6 = arith.index_cast %5 : i32 to index
    %c0 = arith.constant 0 : index
    %7 = vector.load %arg4[%6, %c0] : memref<64x128xf32, #tpu.memory_space<vmem>>, vector<1x128xf32>
    %8 = arith.index_cast %c0_i32 : i32 to index
    %c0_1 = arith.constant 0 : index
    %9 = vector.load %arg7[%8, %c0_1] : memref<8x128xf32, #tpu.memory_space<vmem>>, vector<1x128xf32>
    tpu.vector_store %arg7[%8, %c0_1], %7 {strides = array<i32>} : memref<8x128xf32, #tpu.memory_space<vmem>>, vector<1x128xf32>,
    %c1_i32 = arith.constant 1 : i32
    %10 = arith.addi %2, %c1_i32 : i32
    %11 = arith.index_cast %10 : i32 to index
    %12 = memref.load %arg2[%11] : memref<16xi32, #tpu.memory_space<smem>>
    %13 = arith.index_cast %12 : i32 to index
    %c0_2 = arith.constant 0 : index
    %14 = vector.load %arg4[%13, %c0_2] : memref<64x128xf32, #tpu.memory_space<vmem>>, vector<1x128xf32>
    %15 = arith.index_cast %c1_i32 : i32 to index
    %c0_3 = arith.constant 0 : index
    %16 = vector.load %arg7[%15, %c0_3] : memref<8x128xf32, #tpu.memory_space<vmem>>, vector<1x128xf32>
    tpu.vector_store %arg7[%15, %c0_3], %14 {strides = array<i32>} : memref<8x128xf32, #tpu.memory_space<vmem>>, vector<1x128xf32>,
    %c2_i32 = arith.constant 2 : i32
    %17 = arith.addi %2, %c2_i32 : i32
    %18 = arith.index_cast %17 : i32 to index
    %19 = memref.load %arg2[%18] : memref<16xi32, #tpu.memory_space<smem>>
    %20 = arith.index_cast %19 : i32 to index
    %c0_4 = arith.constant 0 : index
    %21 = vector.load %arg4[%20, %c0_4] : memref<64x128xf32, #tpu.memory_space<vmem>>, vector<1x128xf32>
    %22 = arith.index_cast %c2_i32 : i32 to index
    %c0_5 = arith.constant 0 : index
    %23 = vector.load %arg7[%22, %c0_5] : memref<8x128xf32, #tpu.memory_space<vmem>>, vector<1x128xf32>
    tpu.vector_store %arg7[%22, %c0_5], %21 {strides = array<i32>} : memref<8x128xf32, #tpu.memory_space<vmem>>, vector<1x128xf32>,
    %c3_i32 = arith.constant 3 : i32
    %24 = arith.addi %2, %c3_i32 : i32
    %25 = arith.index_cast %24 : i32 to index
    %26 = memref.load %arg2[%25] : memref<16xi32, #tpu.memory_space<smem>>
    %27 = arith.index_cast %26 : i32 to index
    %c0_6 = arith.constant 0 : index
    %28 = vector.load %arg4[%27, %c0_6] : memref<64x128xf32, #tpu.memory_space<vmem>>, vector<1x128xf32>
    %29 = arith.index_cast %c3_i32 : i32 to index
    %c0_7 = arith.constant 0 : index
    %30 = vector.load %arg7[%29, %c0_7] : memref<8x128xf32, #tpu.memory_space<vmem>>, vector<1x128xf32>
    tpu.vector_store %arg7[%29, %c0_7], %28 {strides = array<i32>} : memref<8x128xf32, #tpu.memory_space<vmem>>, vector<1x128xf32>,
    %c4_i32 = arith.constant 4 : i32
    %31 = arith.addi %2, %c4_i32 : i32
    %32 = arith.index_cast %31 : i32 to index
    %33 = memref.load %arg2[%32] : memref<16xi32, #tpu.memory_space<smem>>
    %34 = arith.index_cast %33 : i32 to index
    %c0_8 = arith.constant 0 : index
    %35 = vector.load %arg4[%34, %c0_8] : memref<64x128xf32, #tpu.memory_space<vmem>>, vector<1x128xf32>
    %36 = arith.index_cast %c4_i32 : i32 to index
    %c0_9 = arith.constant 0 : index
    %37 = vector.load %arg7[%36, %c0_9] : memref<8x128xf32, #tpu.memory_space<vmem>>, vector<1x128xf32>
    tpu.vector_store %arg7[%36, %c0_9], %35 {strides = array<i32>} : memref<8x128xf32, #tpu.memory_space<vmem>>, vector<1x128xf32>,
    %c5_i32 = arith.constant 5 : i32
    %38 = arith.addi %2, %c5_i32 : i32
    %39 = arith.index_cast %38 : i32 to index
    %40 = memref.load %arg2[%39] : memref<16xi32, #tpu.memory_space<smem>>
    %41 = arith.index_cast %40 : i32 to index
    %c0_10 = arith.constant 0 : index
    %42 = vector.load %arg4[%41, %c0_10] : memref<64x128xf32, #tpu.memory_space<vmem>>, vector<1x128xf32>
    %43 = arith.index_cast %c5_i32 : i32 to index
    %c0_11 = arith.constant 0 : index
    %44 = vector.load %arg7[%43, %c0_11] : memref<8x128xf32, #tpu.memory_space<vmem>>, vector<1x128xf32>
    tpu.vector_store %arg7[%43, %c0_11], %42 {strides = array<i32>} : memref<8x128xf32, #tpu.memory_space<vmem>>, vector<1x128xf32>,
    %c6_i32 = arith.constant 6 : i32
    %45 = arith.addi %2, %c6_i32 : i32
    %46 = arith.index_cast %45 : i32 to index
    %47 = memref.load %arg2[%46] : memref<16xi32, #tpu.memory_space<smem>>
    %48 = arith.index_cast %47 : i32 to index
    %c0_12 = arith.constant 0 : index
    %49 = vector.load %arg4[%48, %c0_12] : memref<64x128xf32, #tpu.memory_space<vmem>>, vector<1x128xf32>
    %50 = arith.index_cast %c6_i32 : i32 to index
    %c0_13 = arith.constant 0 : index
    %51 = vector.load %arg7[%50, %c0_13] : memref<8x128xf32, #tpu.memory_space<vmem>>, vector<1x128xf32>
    tpu.vector_store %arg7[%50, %c0_13], %49 {strides = array<i32>} : memref<8x128xf32, #tpu.memory_space<vmem>>, vector<1x128xf32>,
    %c7_i32 = arith.constant 7 : i32
    %52 = arith.addi %2, %c7_i32 : i32
    %53 = arith.index_cast %52 : i32 to index
    %54 = memref.load %arg2[%53] : memref<16xi32, #tpu.memory_space<smem>>
    %55 = arith.index_cast %54 : i32 to index
    %c0_14 = arith.constant 0 : index
    %56 = vector.load %arg4[%55, %c0_14] : memref<64x128xf32, #tpu.memory_space<vmem>>, vector<1x128xf32>
    %57 = arith.index_cast %c7_i32 : i32 to index
    %c0_15 = arith.constant 0 : index
    %58 = vector.load %arg7[%57, %c0_15] : memref<8x128xf32, #tpu.memory_space<vmem>>, vector<1x128xf32>
    tpu.vector_store %arg7[%57, %c0_15], %56 {strides = array<i32>} : memref<8x128xf32, #tpu.memory_space<vmem>>, vector<1x128xf32>,
    %c8_i32_16 = arith.constant 8 : i32
    %c0_17 = arith.constant 0 : index
    %c0_18 = arith.constant 0 : index
    %59 = vector.load %arg7[%c0_17, %c0_18] : memref<8x128xf32, #tpu.memory_space<vmem>>, vector<8x128xf32>
    %c0_19 = arith.constant 0 : index
    %c0_20 = arith.constant 0 : index
    %60 = vector.load %arg5[%c0_19, %c0_20] : memref<8x128xf32, #tpu.memory_space<vmem>>, vector<8x128xf32>
    %61 = arith.addf %59, %60 : vector<8x128xf32>
    %c0_21 = arith.constant 0 : index
    %c0_22 = arith.constant 0 : index
    %c0_23 = arith.constant 0 : index
    %62 = vector.load %arg6[%c0_21, %c0_22, %c0_23] : memref<1x8x128xf32, #tpu.memory_space<vmem>>, vector<1x8x128xf32>
    %63 = vector.shape_cast %62 : vector<1x8x128xf32> to vector<8x128xf32>
    %64 = vector.shape_cast %61 : vector<8x128xf32> to vector<1x8x128xf32>
    tpu.vector_store %arg6[%c0_21, %c0_22, %c0_23], %64 {strides = array<i32>} : memref<1x8x128xf32, #tpu.memory_space<vmem>>, vector<1x8x128xf32>,
    return
  }
  func.func @transform_0(%arg0: i32, %arg1: i32, %arg2: memref<16xi32, #tpu.memory_space<smem>>, %arg3: memref<1xi32, #tpu.memory_space<smem>>) -> (i32, i32) {
    %c0_i32 = arith.constant 0 : i32
    %c0_i32_0 = arith.constant 0 : i32
    %c0_i32_1 = arith.constant 0 : i32
    return %c0_i32, %c0_i32_0 : i32, i32
  }
  func.func @transform_1(%arg0: i32, %arg1: i32, %arg2: memref<16xi32, #tpu.memory_space<smem>>, %arg3: memref<1xi32, #tpu.memory_space<smem>>) -> (i32, i32) {
    %c0_i32 = arith.constant 0 : i32
    %c0_i32_0 = arith.constant 0 : i32
    return %arg1, %c0_i32 : i32, i32
  }
  func.func @transform_2(%arg0: i32, %arg1: i32, %arg2: memref<16xi32, #tpu.memory_space<smem>>, %arg3: memref<1xi32, #tpu.memory_space<smem>>) -> (i32, i32, i32) {
    %c0_i32 = arith.constant 0 : i32
    %c0_i32_0 = arith.constant 0 : i32
    return %arg0, %arg1, %c0_i32 : i32, i32, i32
  }
}

</mosaic_0001>

<llo_original>
// kernel: tpu_custom_call.1
$region0: #{tpu_custom_call.1}
  #allocation0 [shape = 'u32[]', space=smem, size = 0x4, offset = 0x4, fixed_abs, tag = 'smem constant byte address 0x4 - core index']
  #allocation1 [shape = 'u32[144,128]{1,0:T(1,128)}', space=vmem, size = 0x12000, scoped, tag = 'internal scratch']
  #allocation2 [shape = 'f32[8,128]{1,0:T(8,128)}', space=vmem, size = 0x1000, scoped, tag = 'scratch operand']
  #allocation3 [shape = 's32[1]{0}', space=sflag, size = 0x4, scoped, tag = 'scoped memory for tpu_custom_call.1']
  #allocation4 [shape = 'u8[512]{0}', space=smem, size = 0x200, scoped, tag = 'prefetched SMEM operand 0']
  #allocation5 [shape = 's32[1]{0:T(128)S(6)}', space=smem, size = 0x200, scoped, tag = 'prefetched SMEM operand 1']
  %s0 = inlined_call_operand.vmem [shape: s32[16], index: 0, kind: input, shape index: {}]
  %s1 = inlined_call_operand.<no memory space> [shape: s32[1], index: 1, kind: input, shape index: {}]
  %s2 = inlined_call_operand.hbm [shape: f32[64,128], index: 2, kind: input, shape index: {}]
  %s3 = inlined_call_operand.vmem [shape: f32[8,128], index: 3, kind: input, shape index: {}]
  %s4 = inlined_call_operand.hbm [shape: f32[2,8,128], index: 4, kind: output, shape index: {}]
  %s5 = sld [smem:[#allocation0]]
  $region45: #{tpu_custom_call.1} parent=0
    _
  %s7 = ssub.s32 1, %s5
  %s8 = scalar_select 0, %s7, %s5
  %s9 = sshll.u32 %s0, 4
  %s10 = int_to_ptr.vmem [resolvable:$true] %s9
  %12 = dma.vmem_to_smem %s10, 16, [#allocation4], [#allocation3]
  %13 = sst [smem:[#allocation5]] %s1
  %14 = dma.done [#allocation3], 16
  %15 = sfence
  $region1: #{tpu_custom_call.1} parent=0
    #allocation6 [shape = 'u8[32768]{0}', space=vmem, size = 0x8000, scoped, tag = 'input window, operand 2, single buffered']
    #allocation7 [shape = 's32[2]{0}', space=sflag, size = 0x8, scoped, tag = 'scoped memory for tpu_custom_call.1']
    #allocation8 [shape = 's32[2]{0}', space=sflag, size = 0x8, scoped, tag = 'scoped memory for tpu_custom_call.1']
    #allocation9 [shape = 'u8[8192]{0}', space=vmem, size = 0x2000, scoped, tag = 'output window, operand 0']
    %16 = vsyncpa [#allocation7], 0
    %17 = vsyncpa [#allocation8], 0
    %s18 = scalar_lea.sflag [#allocation8], 1
    %19 = vsyncpa %s18, 0
    loop: start=0, step=1, limit=4
    $region2: #{tpu_custom_call.1} parent=1 // loop_pre_header
      _
    $region3: #{tpu_custom_call.1} parent=1 // loop_header
      %s21 = sphi 0, %s25
      %p22 = scmp.ge.s32.totalorder %s21, 4
      %s28 = sphi 0, %s40
      %s29 = sphi 0, %s36
      %s30 = sphi 0, %s28
      %s31 = sphi 0, %s29
      %s32 = sphi 0, %s30
      %s33 = sphi 0, %s31
      %s41 = sphi 0, %s41
      %s43 = sphi 0, %s41
      %s44 = sphi 0, %s43
      %s58 = sphi 0, %s44
      %s64 = sphi 0, %s66
      %s67 = sphi 0, %s64
      %s68 = sphi 0, %s67
      %s84 = sphi 0, %s68
      %s92 = sphi 0, %s94
      %s95 = sphi 0, %s92
      %s96 = sphi 0, %s95
      %s112 = sphi 0, %s96
    $region4: #{tpu_custom_call.1} parent=1 // loop_header_branch
      %24 = sbr.rel (%p22) target = $region8
    $region5: #{tpu_custom_call.1} parent=1 // loop_body
      %s26 = ssub.s32 %s21, 1
      %s27 = ssub.s32 %s21, 2
      %s34 = sadd.s32 1, %s29
      %p35 = scmp.ge.s32.totalorder %s34, 1
      %s36 = scalar_select %p35, 0, %s34
      %s37 = sadd.s32 1, %s28
      %s38 = scalar_select %p35, %s37, %s28
      %p39 = scmp.ge.s32.totalorder %s38, 2
      %s40 = scalar_select %p39, 0, %s38
      %s42 = sadd.s32 %s41, 1
      %p45 = scmp.eq.s32.totalorder %s21, 1
      %p46 = scmp.ne.s32.totalorder %s41, %s43
      %p47 = scmp.eq.s32.totalorder %s21, 0
      %p48 = por %p46, %p47
      %p49 = scmp.ne.s32.totalorder %s41, %s43
      %p50 = scmp.eq.s32.totalorder %s26, 1
      %p51 = por %p49, %p50
      %p52 = scmp.ne.s32.totalorder %s43, %s44
      %p53 = scmp.eq.s32.totalorder %s26, 0
      %p54 = por %p52, %p53
      %p55 = scmp.ne.s32.totalorder %s43, %s44
      %p56 = scmp.eq.s32.totalorder %s27, 1
      %p57 = por %p55, %p56
      %p59 = scmp.ne.s32.totalorder %s44, %s58
      %p60 = scmp.eq.s32.totalorder %s27, 0
      %p61 = por %p59, %p60
      %s62 = ssub.s32 %s29, %s36
      %p63 = scmp.eq.s32.totalorder %s62, 0
      %s65 = sadd.s32 %s64, 1
      %s66 = scalar_select %p63, %s64, %s65
      %p69 = pneg %p63
      %p70 = scmp.eq.s32.totalorder %s21, 1
      %p71 = por %p69, %p70
      %p72 = scmp.ne.s32.totalorder %s64, %s67
      %p73 = scmp.eq.s32.totalorder %s21, 0
      %p74 = por %p72, %p73
      %p75 = scmp.ne.s32.totalorder %s64, %s67
      %p76 = scmp.eq.s32.totalorder %s26, 1
      %p77 = por %p75, %p76
      %p78 = scmp.ne.s32.totalorder %s67, %s68
      %p79 = scmp.eq.s32.totalorder %s26, 0
      %p80 = por %p78, %p79
      %p81 = scmp.ne.s32.totalorder %s67, %s68
      %p82 = scmp.eq.s32.totalorder %s27, 1
      %p83 = por %p81, %p82
      %p85 = scmp.ne.s32.totalorder %s68, %s84
      %p86 = scmp.eq.s32.totalorder %s27, 0
      %p87 = por %p85, %p86
      %s88 = ssub.s32 %s28, %s40
      %s89 = ssub.s32 %s29, %s36
      %s90 = sor.u32 %s88, %s89
      %p91 = scmp.eq.s32.totalorder %s90, 0
      %s93 = sadd.s32 %s92, 1
      %s94 = scalar_select %p91, %s92, %s93
      %p97 = pneg %p91
      %p98 = scmp.eq.s32.totalorder %s21, 1
      %p99 = por %p97, %p98
      %p100 = scmp.ne.s32.totalorder %s92, %s95
      %p101 = scmp.eq.s32.totalorder %s21, 0
      %p102 = por %p100, %p101
      %p103 = scmp.ne.s32.totalorder %s92, %s95
      %p104 = scmp.eq.s32.totalorder %s26, 1
      %p105 = por %p103, %p104
      %p106 = scmp.ne.s32.totalorder %s95, %s96
      %p107 = scmp.eq.s32.totalorder %s26, 0
      %p108 = por %p106, %p107
      %p109 = scmp.ne.s32.totalorder %s95, %s96
      %p110 = scmp.eq.s32.totalorder %s27, 1
      %p111 = por %p109, %p110
      %p113 = scmp.ne.s32.totalorder %s96, %s112
      %p114 = scmp.eq.s32.totalorder %s27, 0
      %p115 = por %p113, %p114
      %p116 = scmp.le.s32.totalorder 1, %s21
      %p117 = scmp.lt.s32.totalorder %s21, 3
      %p118 = pnand %p116, %p117
      %p119 = pneg %p118
      // Predicated region
      $region9: #{tpu_custom_call.1} parent=5 // pred_check
        _
      $region10: #{tpu_custom_call.1} parent=5 // pred_check_branch
        %121 = sbr.rel (%p118) target = $region12
      $region11: #{tpu_custom_call.1} parent=5 // pred_region
        %s122 = ssub.s32 %s21, 1
        // Predicated region
        $region13: #{tpu_custom_call.1} parent=11 // pred_check
          %p123 = pneg %p54
        $region14: #{tpu_custom_call.1} parent=11 // pred_check_branch
          %125 = sbr.rel (%p123) target = $region16
        $region15: #{tpu_custom_call.1} parent=11 // pred_region
          %s127 = ssub.s32 1024, 1024
          %128 = vsyncadd [#allocation7], %s127
          %s129 = sshll.u32 [#allocation6], 4
          %s130 = int_to_ptr.vmem [resolvable:$true] %s129
          %135 = dma.hbm_to_vmem [thread:$0]  %s2, 1024, %s130, [#allocation7], 128, 128, 8
        $region16: #{tpu_custom_call.1} parent=11 // pred_fallthru
          _
        // Predicated region
        $region17: #{tpu_custom_call.1} parent=11 // pred_check
          %p136 = pneg %p80
        $region18: #{tpu_custom_call.1} parent=11 // pred_check_branch
          %138 = sbr.rel (%p136) target = $region20
        $region19: #{tpu_custom_call.1} parent=11 // pred_region
          %p139 = scmp.lt.s32.totalorder %s31, 0
          %s140 = scalar_select %p139, %s31, 0
          %s141 = smul.addr %s140, 8
          %s142 = scalar_lea.vmem %s3, %s141
        $region20: #{tpu_custom_call.1} parent=11 // pred_fallthru
          _
      $region12: #{tpu_custom_call.1} parent=5 // pred_fallthru
        _
      %p143 = scmp.lt.s32.totalorder %s21, 2
      // Predicated region
      $region21: #{tpu_custom_call.1} parent=5 // pred_check
        %p144 = pneg %p143
      $region22: #{tpu_custom_call.1} parent=5 // pred_check_branch
        %146 = sbr.rel (%p144) target = $region24
      $region23: #{tpu_custom_call.1} parent=5 // pred_region
        _
      $region24: #{tpu_custom_call.1} parent=5 // pred_fallthru
        _
      %p147 = scmp.le.s32.totalorder 1, %s21
      %p148 = scmp.lt.s32.totalorder %s21, 3
      %p149 = pnand %p147, %p148
      %p150 = pneg %p149
      // Predicated region
      $region25: #{tpu_custom_call.1} parent=5 // pred_check
        _
      $region26: #{tpu_custom_call.1} parent=5 // pred_check_branch
        %152 = sbr.rel (%p149) target = $region28
      $region27: #{tpu_custom_call.1} parent=5 // pred_region
        %s153 = ssub.s32 %s21, 1
        // Predicated region
        $region29: #{tpu_custom_call.1} parent=27 // pred_check
          %p154 = pneg %p54
        $region30: #{tpu_custom_call.1} parent=27 // pred_check_branch
          %156 = sbr.rel (%p154) target = $region32
        $region31: #{tpu_custom_call.1} parent=27 // pred_region
          %157 = dma.done [#allocation7], 1024
        $region32: #{tpu_custom_call.1} parent=27 // pred_fallthru
          _
        %p158 = pneg %p54
        %p159 = pneg %p51
        %p160 = scmp.lt.s32.totalorder %s31, 0
        %s161 = scalar_select %p160, %s31, 0
        %s162 = smul.addr %s161, 8
        %s163 = scalar_lea.vmem %s3, %s162
        %p164 = pneg %p80
        %p165 = pneg %p77
        %p166 = pneg %p108
        %p167 = pneg %p105
        %s168 = sand.u32 %s95, 1
        %s169 = scalar_lea.sflag [#allocation8], %s168
        %s170 = sand.u32 %s95, 1
        %s171 = smul.addr %s170, 8
        %s172 = scalar_lea.vmem [#allocation9], %s171
        %p173 = scmp.lt.s32.totalorder %s31, 0
        %s174 = scalar_select %p173, %s31, 0
        %s175 = smul.addr %s174, 8
        %s176 = scalar_lea.vmem %s3, %s175
        %s177 = smul.u32 %s30, 8
        %s178 = smul.u32 %s31, 8
        %s179 = sadd.s32 %s177, %s178
        %s180 = sld [smem:[#allocation4 + %s179]]
        %s181 = scalar_lea.vmem [#allocation6], %s180
        %v182 = vld [vmem:[%s181] sm:$0x1]
        %183 = vst [vmem:[#allocation2] sm:$0x1] %v182
        %s184 = sadd.s32 %s179, 1
        %s185 = sld [smem:[#allocation4 + %s184]]
        %s186 = scalar_lea.vmem [#allocation6], %s185
        %v187 = vld [vmem:[%s186] sm:$0x1]
        %188 = vst [vmem:[#allocation2 + $0x1] sm:$0x1] %v187
        %s189 = sadd.s32 %s179, 2
        %s190 = sld [smem:[#allocation4 + %s189]]
        %s191 = scalar_lea.vmem [#allocation6], %s190
        %v192 = vld [vmem:[%s191] sm:$0x1]
        %193 = vst [vmem:[#allocation2 + $0x2] sm:$0x1] %v192
        %s194 = sadd.s32 %s179, 3
        %s195 = sld [smem:[#allocation4 + %s194]]
        %s196 = scalar_lea.vmem [#allocation6], %s195
        %v197 = vld [vmem:[%s196] sm:$0x1]
        %198 = vst [vmem:[#allocation2 + $0x3] sm:$0x1] %v197
        %s199 = sadd.s32 %s179, 4
        %s200 = sld [smem:[#allocation4 + %s199]]
        %s201 = scalar_lea.vmem [#allocation6], %s200
        %v202 = vld [vmem:[%s201] sm:$0x1]
        %203 = vst [vmem:[#allocation2 + $0x4] sm:$0x1] %v202
        %s204 = sadd.s32 %s179, 5
        %s205 = sld [smem:[#allocation4 + %s204]]
        %s206 = scalar_lea.vmem [#allocation6], %s205
        %v207 = vld [vmem:[%s206] sm:$0x1]
        %208 = vst [vmem:[#allocation2 + $0x5] sm:$0x1] %v207
        %s209 = sadd.s32 %s179, 6
        %s210 = sld [smem:[#allocation4 + %s209]]
        %s211 = scalar_lea.vmem [#allocation6], %s210
        %v212 = vld [vmem:[%s211] sm:$0x1]
        %213 = vst [vmem:[#allocation2 + $0x6] sm:$0x1] %v212
        %s214 = sadd.s32 %s179, 7
        %s215 = sld [smem:[#allocation4 + %s214]]
        %s216 = scalar_lea.vmem [#allocation6], %s215
        %v217 = vld [vmem:[%s216] sm:$0x1]
        %218 = vst [vmem:[#allocation2 + $0x7] sm:$0x1] %v217
        %v219 = vld [vmem:[#allocation2] sm:$0xff]
        %v220 = vld [vmem:[%s176] sm:$0xff]
        %v221 = vadd.f32 %v219, %v220
        %222 = vst [vmem:[%s172] sm:$0xff] %v221
        %s223 = sand.u32 %s95, 1
        %s224 = scalar_lea.sflag [#allocation8], %s223
        %s225 = sand.u32 %s95, 1
        %s226 = smul.addr %s225, 8
        %s227 = scalar_lea.vmem [#allocation9], %s226
        // Predicated region
        $region33: #{tpu_custom_call.1} parent=27 // pred_check
          %p228 = pneg %p105
        $region34: #{tpu_custom_call.1} parent=27 // pred_check_branch
          %230 = sbr.rel (%p228) target = $region36
        $region35: #{tpu_custom_call.1} parent=27 // pred_region
          %s232 = ssub.s32 128, 128
          %233 = vsyncadd %s224, %s232
          %s234 = sadd.s32 %s31, %s30
          %s235 = smul.addr %s234, 128
          %s236 = scalar_lea.hbm %s4, %s235
          %s238 = sshll.u32 %s227, 4
          %s239 = int_to_ptr.vmem [resolvable:$true] %s238
          %241 = dma.vmem_to_hbm [thread:$0]  %s239, 128, %s236, %s224
        $region36: #{tpu_custom_call.1} parent=27 // pred_fallthru
          _
      $region28: #{tpu_custom_call.1} parent=5 // pred_fallthru
        _
      %p242 = scmp.le.s32.totalorder 2, %s21
      // Predicated region
      $region37: #{tpu_custom_call.1} parent=5 // pred_check
        %p243 = pneg %p242
      $region38: #{tpu_custom_call.1} parent=5 // pred_check_branch
        %245 = sbr.rel (%p243) target = $region40
      $region39: #{tpu_custom_call.1} parent=5 // pred_region
        %s246 = ssub.s32 %s21, 2
        // Predicated region
        $region41: #{tpu_custom_call.1} parent=39 // pred_check
          %p247 = pneg %p111
        $region42: #{tpu_custom_call.1} parent=39 // pred_check_branch
          %249 = sbr.rel (%p247) target = $region44
        $region43: #{tpu_custom_call.1} parent=39 // pred_region
          %s250 = sand.u32 %s96, 1
          %s251 = scalar_lea.sflag [#allocation8], %s250
          %s252 = sand.u32 %s96, 1
          %s253 = smul.addr %s252, 8
          %s254 = scalar_lea.vmem [#allocation9], %s253
          %255 = dma.done %s251, 128
        $region44: #{tpu_custom_call.1} parent=39 // pred_fallthru
          _
      $region40: #{tpu_custom_call.1} parent=5 // pred_fallthru
        _
    $region6: #{tpu_custom_call.1} parent=1 // loop_footer
      %s25 = sadd.s32 1, %s21
    $region7: #{tpu_custom_call.1} parent=1 // loop_footer_branch
      %20 = sbr.rel target = $region3
    $region8: #{tpu_custom_call.1} parent=1 // loop_exit
      _
    %256 = vsyncpa [#allocation7], 1
    %s257 = scalar_lea.sflag [#allocation7], 1
    %258 = vsyncpa %s257, 1
    %259 = vsyncpa [#allocation8], 1
    %s260 = scalar_lea.sflag [#allocation8], 1
    %261 = vsyncpa %s260, 1

</llo_original>
